<compile_context>
chip_gen: v7x
topology: tpu7x:2x2x1
jax: 0.10.0
libtpu: 0.0.40
codegen_flags: <defaults>
</compile_context>

<pallas_src>
import numpy as np
import jax
import jax.numpy as jnp
from jax import lax
from jax.experimental import pallas as pl
from jax.experimental.pallas import tpu as pltpu


_BIN_CHUNK = 512  # sublane strip for the inverse-CDF compare (bounds VMEM temps)


def _empirical_sampler_kernel(h_ref, u_ref, o_ref):
    """One histogram per grid step.

    h_ref : (Npad, 1) f32  histogram weights, bins along sublanes
    u_ref : (1, Bpad) f32  uniform draws in [0, 1), draws along lanes
    o_ref : (1, Bpad) i32  sampled bin index per draw (lane-dense store)
    """
    h = h_ref[...]                                    # (Npad, 1)
    npad = h.shape[0]

    # ---- inclusive prefix sum (CDF) along the bin (sublane) axis ----------
    # Hillis-Steele: log2(Npad) circular-roll + masked-add steps on the XLU.
    row = lax.broadcasted_iota(jnp.int32, (npad, 1), 0)

    # pltpu.roll is a circular rotate; probe its rotation convention once so
    # the scan is robust either way.  np_dir is uniformly all-True/all-False.
    probe = pltpu.roll(row, 1, axis=0)
    np_dir = probe == jnp.where(row == 0, npad - 1, row - 1)

    cdf = h
    d = 1
    while d < npad:
        fwd = jnp.where(
            np_dir,
            pltpu.roll(cdf, d, axis=0),
            pltpu.roll(cdf, npad - d, axis=0),
        )
        cdf = cdf + jnp.where(row >= d, fwd, 0.0)
        d *= 2

    # Total mass straight from the scan (cdf is non-decreasing, so its max is
    # its last entry) -> avoids the rounding hazard of a separate jnp.sum(h).
    total = jnp.max(cdf, axis=0, keepdims=True)       # (1, 1)

    u = u_ref[...]                                    # (1, Bpad)
    t = u * total                                     # (1, Bpad) thresholds

    # ---- inverse-CDF search: idx[b] = #{ j : cdf[j] <= t[b], cdf[j] < total }
    # The `< total` clause guarantees zero-mass bins (incl. zero padding past
    # the last real bin) are never selected, even if t rounds up to total.
    if npad <= _BIN_CHUNK:
        take = (cdf <= t) & (cdf < total)             # (Npad, Bpad) broadcast
        idx = jnp.sum(take.astype(jnp.int32), axis=0, keepdims=True)
    else:
        idx = jnp.zeros(t.shape, jnp.int32)
        for c in range(0, npad, _BIN_CHUNK):          # sublane strips
            blk = cdf[c:c + _BIN_CHUNK, :]
            take = (blk <= t) & (blk < total)
            idx = idx + jnp.sum(take.astype(jnp.int32), axis=0, keepdims=True)

    o_ref[...] = jnp.minimum(idx, npad - 1)           # belt-and-braces clamp


def empirical_sampler(hist_col, uniforms):
    """hist_col: (H, Npad, 1) f32; uniforms: (H, 1, Bpad) f32 -> (H, 1, Bpad) i32."""
    H, npad, _ = hist_col.shape
    _, _, bpad = uniforms.shape
    return pl.pallas_call(
        _empirical_sampler_kernel,
        out_shape=jax.ShapeDtypeStruct((H, 1, bpad), jnp.int32),
        grid=(H,),
        in_specs=[
            pl.BlockSpec((pl.Squeezed(), npad, 1), lambda i: (i, 0, 0)),
            pl.BlockSpec((pl.Squeezed(), 1, bpad), lambda i: (i, 0, 0)),
        ],
        out_specs=pl.BlockSpec((pl.Squeezed(), 1, bpad), lambda i: (i, 0, 0)),
        compiler_params=pltpu.CompilerParams(dimension_semantics=("parallel",)),
    )(hist_col, uniforms)


def build_histograms(prop_dicts):
    """Mirrors EmpiricalSampler.__init__ dict -> dense histogram conversion."""
    hists = []
    for prop in prop_dicts:
        bin_idx = np.array([int(k) for k in prop.keys()], dtype=np.int64)
        bin_num = np.array([float(v) for v in prop.values()], dtype=np.float32)
        hist_full = np.zeros(int(bin_idx.max()) + 1, dtype=np.float32)
        hist_full[bin_idx] = bin_num
        hists.append(hist_full)
    return hists


if __name__ == "__main__":
    # Deterministic "empirical" property histograms (dict form, as the module accepts).
    prop_dicts = [
        {1: 3.0, 2: 5.0, 4: 2.0, 7: 1.0},           # property 0: bins 0..7
        {0: 1.0, 3: 4.0, 5: 2.5, 9: 0.5, 11: 2.0},  # property 1: bins 0..11
    ]
    hists = build_histograms(prop_dicts)
    batch_size = 8
    H = len(hists)

    # pad bins / draws to TPU-friendly extents
    max_bins = max(h.shape[0] for h in hists)
    NPAD = max(128, ((max_bins + 127) // 128) * 128)
    BPAD = max(128, ((batch_size + 127) // 128) * 128)

    hist_col = np.zeros((H, NPAD, 1), dtype=np.float32)
    for i, h in enumerate(hists):
        hist_col[i, : h.shape[0], 0] = h
    hist_col = jnp.asarray(hist_col)

    key = jax.random.PRNGKey(0)
    uniforms = jax.random.uniform(key, (H, 1, BPAD), dtype=jnp.float32)

    out = empirical_sampler(hist_col, uniforms)
    out = jax.block_until_ready(out)

    # torch.cat(prop_list, dim=-1): per-histogram sample vectors concatenated
    samples = np.asarray(out[:, 0, :batch_size]).reshape(-1)     # (H * batch_size,)
    assert samples.shape == (H * batch_size,)

    # sanity: every sampled index is in range and carries positive mass
    for i in range(H):
        seg = samples[i * batch_size: (i + 1) * batch_size]
        assert np.all(seg >= 0) and np.all(seg < hists[i].shape[0])
        assert np.all(hists[i][seg] > 0.0), "sampled a zero-probability bin"

    # exact check vs a NumPy float32 inverse-CDF reference (same uniforms,
    # exact integer-valued masses so summation order does not matter)
    for i in range(H):
        cdf_np = np.cumsum(hists[i].astype(np.float32), dtype=np.float32)
        tot = cdf_np[-1]
        u_np = np.asarray(uniforms[i, 0, :batch_size], dtype=np.float32)
        t_np = (u_np * tot).astype(np.float32)
        ref = np.sum(
            (cdf_np[None, :] <= t_np[:, None]) & (cdf_np[None, :] < tot), axis=1
        ).astype(np.int32)
        seg = samples[i * batch_size: (i + 1) * batch_size].astype(np.int32)
        np.testing.assert_array_equal(seg, ref)

    print("KERNEL_OK")
</pallas_src>

<mosaic_0001>
module attributes {stable_mosaic.version = 11 : i64} {
  func.func @_empirical_sampler_kernel(%arg0: i32, %arg1: memref<1x128x1xf32, #tpu.memory_space<vmem>>, %arg2: memref<1x1x128xf32, #tpu.memory_space<vmem>>, %arg3: memref<1x1x128xi32, #tpu.memory_space<vmem>>) attributes {dimension_semantics = [#tpu.dimension_semantics<parallel>], iteration_bounds = array<i64: 2>, scalar_prefetch = 0 : i64, scratch_operands = 0 : i64, tpu.core_type = #tpu.core_type<tc>, window_params = [{transform_indices = @transform_0, window_bounds = array<i64: 1, 128, 1>}, {transform_indices = @transform_1, window_bounds = array<i64: 1, 1, 128>}, {transform_indices = @transform_2, window_bounds = array<i64: 1, 1, 128>}]} {
    %c0 = arith.constant 0 : index
    %c0_0 = arith.constant 0 : index
    %c0_1 = arith.constant 0 : index
    %0 = vector.load %arg1[%c0, %c0_0, %c0_1] : memref<1x128x1xf32, #tpu.memory_space<vmem>>, vector<1x128x1xf32>
    %1 = vector.shape_cast %0 : vector<1x128x1xf32> to vector<128x1xf32>
    %2 = tpu.iota {dimensions = array<i32: 0>} : vector<128x1xi32>
    %c1_i32 = arith.constant 1 : i32
    %3 = tpu.dynamic_rotate %2 by %c1_i32 dim 0 : vector<128x1xi32>, i32 -> vector<128x1xi32>
    %c0_i32 = arith.constant 0 : i32
    %4 = vector.broadcast %c0_i32 : i32 to vector<128x1xi32>
    %5 = arith.cmpi eq, %2, %4 : vector<128x1xi32>
    %c1_i32_2 = arith.constant 1 : i32
    %6 = vector.broadcast %c1_i32_2 : i32 to vector<128x1xi32>
    %7 = arith.subi %2, %6 : vector<128x1xi32>
    %c127_i32 = arith.constant 127 : i32
    %8 = vector.broadcast %c127_i32 : i32 to vector<128x1xi32>
    %9 = arith.select %5, %8, %7 : vector<128x1xi1>, vector<128x1xi32>
    %10 = arith.cmpi eq, %3, %9 : vector<128x1xi32>
    %c1_i32_3 = arith.constant 1 : i32
    %11 = tpu.dynamic_rotate %1 by %c1_i32_3 dim 0 : vector<128x1xf32>, i32 -> vector<128x1xf32>
    %c127_i32_4 = arith.constant 127 : i32
    %12 = tpu.dynamic_rotate %1 by %c127_i32_4 dim 0 : vector<128x1xf32>, i32 -> vector<128x1xf32>
    %13 = arith.select %10, %11, %12 : vector<128x1xi1>, vector<128x1xf32>
    %c1_i32_5 = arith.constant 1 : i32
    %14 = vector.broadcast %c1_i32_5 : i32 to vector<128x1xi32>
    %15 = arith.cmpi sge, %2, %14 : vector<128x1xi32>
    %cst = arith.constant 0.000000e+00 : f32
    %16 = vector.broadcast %cst : f32 to vector<128x1xf32>
    %17 = arith.select %15, %13, %16 : vector<128x1xi1>, vector<128x1xf32>
    %18 = arith.addf %1, %17 : vector<128x1xf32>
    %c2_i32 = arith.constant 2 : i32
    %19 = tpu.dynamic_rotate %18 by %c2_i32 dim 0 : vector<128x1xf32>, i32 -> vector<128x1xf32>
    %c126_i32 = arith.constant 126 : i32
    %20 = tpu.dynamic_rotate %18 by %c126_i32 dim 0 : vector<128x1xf32>, i32 -> vector<128x1xf32>
    %21 = arith.select %10, %19, %20 : vector<128x1xi1>, vector<128x1xf32>
    %c2_i32_6 = arith.constant 2 : i32
    %22 = vector.broadcast %c2_i32_6 : i32 to vector<128x1xi32>
    %23 = arith.cmpi sge, %2, %22 : vector<128x1xi32>
    %cst_7 = arith.constant 0.000000e+00 : f32
    %24 = vector.broadcast %cst_7 : f32 to vector<128x1xf32>
    %25 = arith.select %23, %21, %24 : vector<128x1xi1>, vector<128x1xf32>
    %26 = arith.addf %18, %25 : vector<128x1xf32>
    %c4_i32 = arith.constant 4 : i32
    %27 = tpu.dynamic_rotate %26 by %c4_i32 dim 0 : vector<128x1xf32>, i32 -> vector<128x1xf32>
    %c124_i32 = arith.constant 124 : i32
    %28 = tpu.dynamic_rotate %26 by %c124_i32 dim 0 : vector<128x1xf32>, i32 -> vector<128x1xf32>
    %29 = arith.select %10, %27, %28 : vector<128x1xi1>, vector<128x1xf32>
    %c4_i32_8 = arith.constant 4 : i32
    %30 = vector.broadcast %c4_i32_8 : i32 to vector<128x1xi32>
    %31 = arith.cmpi sge, %2, %30 : vector<128x1xi32>
    %cst_9 = arith.constant 0.000000e+00 : f32
    %32 = vector.broadcast %cst_9 : f32 to vector<128x1xf32>
    %33 = arith.select %31, %29, %32 : vector<128x1xi1>, vector<128x1xf32>
    %34 = arith.addf %26, %33 : vector<128x1xf32>
    %c8_i32 = arith.constant 8 : i32
    %35 = tpu.dynamic_rotate %34 by %c8_i32 dim 0 : vector<128x1xf32>, i32 -> vector<128x1xf32>
    %c120_i32 = arith.constant 120 : i32
    %36 = tpu.dynamic_rotate %34 by %c120_i32 dim 0 : vector<128x1xf32>, i32 -> vector<128x1xf32>
    %37 = arith.select %10, %35, %36 : vector<128x1xi1>, vector<128x1xf32>
    %c8_i32_10 = arith.constant 8 : i32
    %38 = vector.broadcast %c8_i32_10 : i32 to vector<128x1xi32>
    %39 = arith.cmpi sge, %2, %38 : vector<128x1xi32>
    %cst_11 = arith.constant 0.000000e+00 : f32
    %40 = vector.broadcast %cst_11 : f32 to vector<128x1xf32>
    %41 = arith.select %39, %37, %40 : vector<128x1xi1>, vector<128x1xf32>
    %42 = arith.addf %34, %41 : vector<128x1xf32>
    %c16_i32 = arith.constant 16 : i32
    %43 = tpu.dynamic_rotate %42 by %c16_i32 dim 0 : vector<128x1xf32>, i32 -> vector<128x1xf32>
    %c112_i32 = arith.constant 112 : i32
    %44 = tpu.dynamic_rotate %42 by %c112_i32 dim 0 : vector<128x1xf32>, i32 -> vector<128x1xf32>
    %45 = arith.select %10, %43, %44 : vector<128x1xi1>, vector<128x1xf32>
    %c16_i32_12 = arith.constant 16 : i32
    %46 = vector.broadcast %c16_i32_12 : i32 to vector<128x1xi32>
    %47 = arith.cmpi sge, %2, %46 : vector<128x1xi32>
    %cst_13 = arith.constant 0.000000e+00 : f32
    %48 = vector.broadcast %cst_13 : f32 to vector<128x1xf32>
    %49 = arith.select %47, %45, %48 : vector<128x1xi1>, vector<128x1xf32>
    %50 = arith.addf %42, %49 : vector<128x1xf32>
    %c32_i32 = arith.constant 32 : i32
    %51 = tpu.dynamic_rotate %50 by %c32_i32 dim 0 : vector<128x1xf32>, i32 -> vector<128x1xf32>
    %c96_i32 = arith.constant 96 : i32
    %52 = tpu.dynamic_rotate %50 by %c96_i32 dim 0 : vector<128x1xf32>, i32 -> vector<128x1xf32>
    %53 = arith.select %10, %51, %52 : vector<128x1xi1>, vector<128x1xf32>
    %c32_i32_14 = arith.constant 32 : i32
    %54 = vector.broadcast %c32_i32_14 : i32 to vector<128x1xi32>
    %55 = arith.cmpi sge, %2, %54 : vector<128x1xi32>
    %cst_15 = arith.constant 0.000000e+00 : f32
    %56 = vector.broadcast %cst_15 : f32 to vector<128x1xf32>
    %57 = arith.select %55, %53, %56 : vector<128x1xi1>, vector<128x1xf32>
    %58 = arith.addf %50, %57 : vector<128x1xf32>
    %c64_i32 = arith.constant 64 : i32
    %59 = tpu.dynamic_rotate %58 by %c64_i32 dim 0 : vector<128x1xf32>, i32 -> vector<128x1xf32>
    %c64_i32_16 = arith.constant 64 : i32
    %60 = tpu.dynamic_rotate %58 by %c64_i32_16 dim 0 : vector<128x1xf32>, i32 -> vector<128x1xf32>
    %61 = arith.select %10, %59, %60 : vector<128x1xi1>, vector<128x1xf32>
    %c64_i32_17 = arith.constant 64 : i32
    %62 = vector.broadcast %c64_i32_17 : i32 to vector<128x1xi32>
    %63 = arith.cmpi sge, %2, %62 : vector<128x1xi32>
    %cst_18 = arith.constant 0.000000e+00 : f32
    %64 = vector.broadcast %cst_18 : f32 to vector<128x1xf32>
    %65 = arith.select %63, %61, %64 : vector<128x1xi1>, vector<128x1xf32>
    %66 = arith.addf %58, %65 : vector<128x1xf32>
    %cst_19 = arith.constant dense<0xFF800000> : vector<1xf32>
    %67 = vector.multi_reduction <maximumf>, %66, %cst_19 [0] : vector<128x1xf32> to vector<1xf32>
    %68 = vector.shape_cast %67 : vector<1xf32> to vector<1x1xf32>
    %c0_20 = arith.constant 0 : index
    %c0_21 = arith.constant 0 : index
    %c0_22 = arith.constant 0 : index
    %69 = vector.load %arg2[%c0_20, %c0_21, %c0_22] : memref<1x1x128xf32, #tpu.memory_space<vmem>>, vector<1x1x128xf32>
    %70 = vector.shape_cast %69 : vector<1x1x128xf32> to vector<1x128xf32>
    %71 = vector.broadcast %68 : vector<1x1xf32> to vector<1x128xf32>
    %72 = arith.mulf %70, %71 : vector<1x128xf32>
    %73 = vector.broadcast %66 : vector<128x1xf32> to vector<128x128xf32>
    %74 = vector.broadcast %72 : vector<1x128xf32> to vector<128x128xf32>
    %75 = arith.cmpf ole, %73, %74 : vector<128x128xf32>
    %76 = vector.broadcast %68 : vector<1x1xf32> to vector<128x1xf32>
    %77 = arith.cmpf olt, %66, %76 : vector<128x1xf32>
    %78 = vector.broadcast %77 : vector<128x1xi1> to vector<128x128xi1>
    %79 = arith.andi %75, %78 : vector<128x128xi1>
    %80 = arith.extui %79 : vector<128x128xi1> to vector<128x128xi32>
    %cst_23 = arith.constant dense<0> : vector<128xi32>
    %81 = vector.multi_reduction <add>, %80, %cst_23 [0] : vector<128x128xi32> to vector<128xi32>
    %82 = vector.shape_cast %81 : vector<128xi32> to vector<1x128xi32>
    %c127_i32_24 = arith.constant 127 : i32
    %83 = vector.broadcast %c127_i32_24 : i32 to vector<1x128xi32>
    %84 = arith.minsi %82, %83 : vector<1x128xi32>
    %c0_25 = arith.constant 0 : index
    %c0_26 = arith.constant 0 : index
    %c0_27 = arith.constant 0 : index
    %85 = vector.load %arg3[%c0_25, %c0_26, %c0_27] : memref<1x1x128xi32, #tpu.memory_space<vmem>>, vector<1x1x128xi32>
    %86 = vector.shape_cast %85 : vector<1x1x128xi32> to vector<1x128xi32>
    %87 = vector.shape_cast %84 : vector<1x128xi32> to vector<1x1x128xi32>
    tpu.vector_store %arg3[%c0_25, %c0_26, %c0_27], %87 {strides = array<i32>} : memref<1x1x128xi32, #tpu.memory_space<vmem>>, vector<1x1x128xi32>,
    return
  }
  func.func @transform_0(%arg0: i32) -> (i32, i32, i32) {
    %c0_i32 = arith.constant 0 : i32
    %c0_i32_0 = arith.constant 0 : i32
    %c0_i32_1 = arith.constant 0 : i32
    return %arg0, %c0_i32, %c0_i32_0 : i32, i32, i32
  }
  func.func @transform_1(%arg0: i32) -> (i32, i32, i32) {
    %c0_i32 = arith.constant 0 : i32
    %c0_i32_0 = arith.constant 0 : i32
    %c0_i32_1 = arith.constant 0 : i32
    return %arg0, %c0_i32, %c0_i32_0 : i32, i32, i32
  }
  func.func @transform_2(%arg0: i32) -> (i32, i32, i32) {
    %c0_i32 = arith.constant 0 : i32
    %c0_i32_0 = arith.constant 0 : i32
    %c0_i32_1 = arith.constant 0 : i32
    return %arg0, %c0_i32, %c0_i32_0 : i32, i32, i32
  }
}

</mosaic_0001>

<llo_original>
// kernel: tpu_custom_call.1
$region0: #{tpu_custom_call.1}
  #allocation0 [shape = 'u32[]', space=smem, size = 0x4, offset = 0x4, fixed_abs, tag = 'smem constant byte address 0x4 - core index']
  #allocation1 [shape = 'u32[144,128]{1,0:T(1,128)}', space=vmem, size = 0x12000, scoped, tag = 'internal scratch']
  %s0 = inlined_call_operand.vmem [shape: f32[2,128,1], index: 0, kind: input, shape index: {}]
  %s1 = inlined_call_operand.vmem [shape: f32[2,1,128], index: 1, kind: input, shape index: {}]
  %s2 = inlined_call_operand.hbm [shape: s32[2,1,128], index: 2, kind: output, shape index: {}]
  %s3 = sld [smem:[#allocation0]]
  $region41: #{tpu_custom_call.1} parent=0
    _
  %s5 = ssub.s32 1, %s3
  %s6 = scalar_select 0, %s5, %s3
  $region1: #{tpu_custom_call.1} parent=0
    #allocation2 [shape = 'u8[1024]{0}', space=vmem, size = 0x400, scoped, tag = 'output window, operand 0']
    #allocation3 [shape = 's32[2]{0}', space=sflag, size = 0x8, scoped, tag = 'scoped memory for tpu_custom_call.1']
    %7 = vsyncpa [#allocation3], 0
    %s8 = scalar_lea.sflag [#allocation3], 1
    %9 = vsyncpa %s8, 0
    loop: start=0, step=1, limit=4
    $region2: #{tpu_custom_call.1} parent=1 // loop_pre_header
      _
    $region3: #{tpu_custom_call.1} parent=1 // loop_header
      %s11 = sphi 0, %s15
      %p12 = scmp.ge.s32.totalorder %s11, 4
      %s21 = sphi 0, %s23
      %s24 = sphi 0, %s21
      %s25 = sphi 0, %s24
      %s41 = sphi 0, %s25
      %s47 = sphi 0, %s49
      %s50 = sphi 0, %s47
      %s51 = sphi 0, %s50
      %s67 = sphi 0, %s51
      %s73 = sphi 0, %s75
      %s76 = sphi 0, %s73
      %s77 = sphi 0, %s76
      %s93 = sphi 0, %s77
    $region4: #{tpu_custom_call.1} parent=1 // loop_header_branch
      %14 = sbr.rel (%p12) target = $region8
    $region5: #{tpu_custom_call.1} parent=1 // loop_body
      %s16 = ssub.s32 %s11, 1
      %s17 = ssub.s32 %s11, 2
      %s18 = sadd.s32 %s11, 1
      %s19 = ssub.s32 %s11, %s18
      %p20 = scmp.eq.s32.totalorder %s19, 0
      %s22 = sadd.s32 %s21, 1
      %s23 = scalar_select %p20, %s21, %s22
      %p26 = pneg %p20
      %p27 = scmp.eq.s32.totalorder %s11, 1
      %p28 = por %p26, %p27
      %p29 = scmp.ne.s32.totalorder %s21, %s24
      %p30 = scmp.eq.s32.totalorder %s11, 0
      %p31 = por %p29, %p30
      %p32 = scmp.ne.s32.totalorder %s21, %s24
      %p33 = scmp.eq.s32.totalorder %s16, 1
      %p34 = por %p32, %p33
      %p35 = scmp.ne.s32.totalorder %s24, %s25
      %p36 = scmp.eq.s32.totalorder %s16, 0
      %p37 = por %p35, %p36
      %p38 = scmp.ne.s32.totalorder %s24, %s25
      %p39 = scmp.eq.s32.totalorder %s17, 1
      %p40 = por %p38, %p39
      %p42 = scmp.ne.s32.totalorder %s25, %s41
      %p43 = scmp.eq.s32.totalorder %s17, 0
      %p44 = por %p42, %p43
      %s45 = ssub.s32 %s11, %s18
      %p46 = scmp.eq.s32.totalorder %s45, 0
      %s48 = sadd.s32 %s47, 1
      %s49 = scalar_select %p46, %s47, %s48
      %p52 = pneg %p46
      %p53 = scmp.eq.s32.totalorder %s11, 1
      %p54 = por %p52, %p53
      %p55 = scmp.ne.s32.totalorder %s47, %s50
      %p56 = scmp.eq.s32.totalorder %s11, 0
      %p57 = por %p55, %p56
      %p58 = scmp.ne.s32.totalorder %s47, %s50
      %p59 = scmp.eq.s32.totalorder %s16, 1
      %p60 = por %p58, %p59
      %p61 = scmp.ne.s32.totalorder %s50, %s51
      %p62 = scmp.eq.s32.totalorder %s16, 0
      %p63 = por %p61, %p62
      %p64 = scmp.ne.s32.totalorder %s50, %s51
      %p65 = scmp.eq.s32.totalorder %s17, 1
      %p66 = por %p64, %p65
      %p68 = scmp.ne.s32.totalorder %s51, %s67
      %p69 = scmp.eq.s32.totalorder %s17, 0
      %p70 = por %p68, %p69
      %s71 = ssub.s32 %s11, %s18
      %p72 = scmp.eq.s32.totalorder %s71, 0
      %s74 = sadd.s32 %s73, 1
      %s75 = scalar_select %p72, %s73, %s74
      %p78 = pneg %p72
      %p79 = scmp.eq.s32.totalorder %s11, 1
      %p80 = por %p78, %p79
      %p81 = scmp.ne.s32.totalorder %s73, %s76
      %p82 = scmp.eq.s32.totalorder %s11, 0
      %p83 = por %p81, %p82
      %p84 = scmp.ne.s32.totalorder %s73, %s76
      %p85 = scmp.eq.s32.totalorder %s16, 1
      %p86 = por %p84, %p85
      %p87 = scmp.ne.s32.totalorder %s76, %s77
      %p88 = scmp.eq.s32.totalorder %s16, 0
      %p89 = por %p87, %p88
      %p90 = scmp.ne.s32.totalorder %s76, %s77
      %p91 = scmp.eq.s32.totalorder %s17, 1
      %p92 = por %p90, %p91
      %p94 = scmp.ne.s32.totalorder %s77, %s93
      %p95 = scmp.eq.s32.totalorder %s17, 0
      %p96 = por %p94, %p95
      %p97 = scmp.le.s32.totalorder 1, %s11
      %p98 = scmp.lt.s32.totalorder %s11, 3
      %p99 = pnand %p97, %p98
      %p100 = pneg %p99
      // Predicated region
      $region9: #{tpu_custom_call.1} parent=5 // pred_check
        _
      $region10: #{tpu_custom_call.1} parent=5 // pred_check_branch
        %102 = sbr.rel (%p99) target = $region12
      $region11: #{tpu_custom_call.1} parent=5 // pred_region
        %s103 = ssub.s32 %s11, 1
      $region12: #{tpu_custom_call.1} parent=5 // pred_fallthru
        _
      %p104 = scmp.lt.s32.totalorder %s11, 2
      // Predicated region
      $region13: #{tpu_custom_call.1} parent=5 // pred_check
        %p105 = pneg %p104
      $region14: #{tpu_custom_call.1} parent=5 // pred_check_branch
        %107 = sbr.rel (%p105) target = $region16
      $region15: #{tpu_custom_call.1} parent=5 // pred_region
        // Predicated region
        $region17: #{tpu_custom_call.1} parent=15 // pred_check
          %p108 = pneg %p31
        $region18: #{tpu_custom_call.1} parent=15 // pred_check_branch
          %110 = sbr.rel (%p108) target = $region20
        $region19: #{tpu_custom_call.1} parent=15 // pred_region
          %p111 = scmp.lt.s32.totalorder %s11, 1
          %s112 = scalar_select %p111, %s11, 1
          %s113 = smul.addr %s112, 16
          %s114 = smul.addr %s113, 8
          %s115 = scalar_lea.vmem %s0, %s114
        $region20: #{tpu_custom_call.1} parent=15 // pred_fallthru
          _
        // Predicated region
        $region21: #{tpu_custom_call.1} parent=15 // pred_check
          %p116 = pneg %p57
        $region22: #{tpu_custom_call.1} parent=15 // pred_check_branch
          %118 = sbr.rel (%p116) target = $region24
        $region23: #{tpu_custom_call.1} parent=15 // pred_region
          %p119 = scmp.lt.s32.totalorder %s11, 1
          %s120 = scalar_select %p119, %s11, 1
          %s121 = scalar_lea.vmem %s1, %s120
        $region24: #{tpu_custom_call.1} parent=15 // pred_fallthru
          _
      $region16: #{tpu_custom_call.1} parent=5 // pred_fallthru
        _
      %p122 = scmp.le.s32.totalorder 1, %s11
      %p123 = scmp.lt.s32.totalorder %s11, 3
      %p124 = pnand %p122, %p123
      %p125 = pneg %p124
      // Predicated region
      $region25: #{tpu_custom_call.1} parent=5 // pred_check
        _
      $region26: #{tpu_custom_call.1} parent=5 // pred_check_branch
        %127 = sbr.rel (%p124) target = $region28
      $region27: #{tpu_custom_call.1} parent=5 // pred_region
        %s128 = ssub.s32 %s11, 1
        %p129 = scmp.lt.s32.totalorder %s16, 1
        %s130 = scalar_select %p129, %s16, 1
        %s131 = smul.addr %s130, 16
        %s132 = smul.addr %s131, 8
        %s133 = scalar_lea.vmem %s0, %s132
        %p134 = pneg %p37
        %p135 = pneg %p34
        %p136 = scmp.lt.s32.totalorder %s16, 1
        %s137 = scalar_select %p136, %s16, 1
        %s138 = scalar_lea.vmem %s1, %s137
        %p139 = pneg %p63
        %p140 = pneg %p60
        %p141 = pneg %p89
        %p142 = pneg %p86
        %s143 = sand.u32 %s76, 1
        %s144 = scalar_lea.sflag [#allocation3], %s143
        %s145 = sand.u32 %s76, 1
        %s146 = scalar_lea.vmem [#allocation2], %s145
        %p147 = scmp.lt.s32.totalorder %s16, 1
        %s148 = scalar_select %p147, %s16, 1
        %s149 = smul.addr %s148, 16
        %s150 = smul.addr %s149, 8
        %s151 = scalar_lea.vmem %s0, %s150
        %p152 = scmp.lt.s32.totalorder %s16, 1
        %s153 = scalar_select %p152, %s16, 1
        %s154 = scalar_lea.vmem %s1, %s153
        %v155 = vld [vmem:[%s151] sm:$0xff]
        %v156 = vld [vmem:[%s151 + $0x8] sm:$0xff]
        %v157 = vld [vmem:[%s151 + $0x10] sm:$0xff]
        %v158 = vld [vmem:[%s151 + $0x18] sm:$0xff]
        %v159 = vld [vmem:[%s151 + $0x20] sm:$0xff]
        %v160 = vld [vmem:[%s151 + $0x28] sm:$0xff]
        %v161 = vld [vmem:[%s151 + $0x30] sm:$0xff]
        %v162 = vld [vmem:[%s151 + $0x38] sm:$0xff]
        %v163 = vld [vmem:[%s151 + $0x40] sm:$0xff]
        %v164 = vld [vmem:[%s151 + $0x48] sm:$0xff]
        %v165 = vld [vmem:[%s151 + $0x50] sm:$0xff]
        %v166 = vld [vmem:[%s151 + $0x58] sm:$0xff]
        %v167 = vld [vmem:[%s151 + $0x60] sm:$0xff]
        %v168 = vld [vmem:[%s151 + $0x68] sm:$0xff]
        %v169 = vld [vmem:[%s151 + $0x70] sm:$0xff]
        %v170 = vld [vmem:[%s151 + $0x78] sm:$0xff]
        %v171 = vlaneseq
        %v172 = vshrl.u32 %v171, 7
        %v173 = vadd.s32 %v172, 8
        %v174 = vadd.s32 %v172, 16
        %v175 = vadd.s32 %v172, 24
        %v176 = vadd.s32 %v172, 32
        %v177 = vadd.s32 %v172, 40
        %v178 = vadd.s32 %v172, 48
        %v179 = vadd.s32 %v172, 56
        %v180 = vadd.s32 %v172, 64
        %v181 = vadd.s32 %v172, 72
        %v182 = vadd.s32 %v172, 80
        %v183 = vadd.s32 %v172, 88
        %v184 = vadd.s32 %v172, 96
        %v185 = vadd.s32 %v172, 104
        %v186 = vadd.s32 %v172, 112
        %v187 = vadd.s32 %v172, 120
        %v188 = vrot.slane %v172, 7
        %v189 = vrot.slane %v173, 7
        %v190 = vrot.slane %v174, 7
        %v191 = vrot.slane %v175, 7
        %v192 = vrot.slane %v176, 7
        %v193 = vrot.slane %v177, 7
        %v194 = vrot.slane %v178, 7
        %v195 = vrot.slane %v179, 7
        %v196 = vrot.slane %v180, 7
        %v197 = vrot.slane %v181, 7
        %v198 = vrot.slane %v182, 7
        %v199 = vrot.slane %v183, 7
        %v200 = vrot.slane %v184, 7
        %v201 = vrot.slane %v185, 7
        %v202 = vrot.slane %v186, 7
        %v203 = vrot.slane %v187, 7
        %vm204 = vcmp.lt.s32.totalorder %v172, 1
        %v205 = vsel %vm204, %v202, %v203
        %v206 = vsel %vm204, %v201, %v202
        %v207 = vsel %vm204, %v200, %v201
        %v208 = vsel %vm204, %v199, %v200
        %v209 = vsel %vm204, %v198, %v199
        %v210 = vsel %vm204, %v197, %v198
        %v211 = vsel %vm204, %v196, %v197
        %v212 = vsel %vm204, %v195, %v196
        %v213 = vsel %vm204, %v194, %v195
        %v214 = vsel %vm204, %v193, %v194
        %v215 = vsel %vm204, %v192, %v193
        %v216 = vsel %vm204, %v191, %v192
        %v217 = vsel %vm204, %v190, %v191
        %v218 = vsel %vm204, %v189, %v190
        %v219 = vsel %vm204, %v188, %v189
        %v220 = vsel %vm204, %v203, %v188
        %vm221 = vcmp.eq.s32.totalorder %v172, 0
        %vm222 = vcmp.eq.s32.totalorder %v173, 0
        %vm223 = vcmp.eq.s32.totalorder %v174, 0
        %vm224 = vcmp.eq.s32.totalorder %v175, 0
        %vm225 = vcmp.eq.s32.totalorder %v176, 0
        %vm226 = vcmp.eq.s32.totalorder %v177, 0
        %vm227 = vcmp.eq.s32.totalorder %v178, 0
        %vm228 = vcmp.eq.s32.totalorder %v179, 0
        %vm229 = vcmp.eq.s32.totalorder %v180, 0
        %vm230 = vcmp.eq.s32.totalorder %v181, 0
        %vm231 = vcmp.eq.s32.totalorder %v182, 0
        %vm232 = vcmp.eq.s32.totalorder %v183, 0
        %vm233 = vcmp.eq.s32.totalorder %v184, 0
        %vm234 = vcmp.eq.s32.totalorder %v185, 0
        %vm235 = vcmp.eq.s32.totalorder %v186, 0
        %vm236 = vcmp.eq.s32.totalorder %v187, 0
        %v237 = vsub.s32 %v172, 1
        %v238 = vsub.s32 %v173, 1
        %v239 = vsub.s32 %v174, 1
        %v240 = vsub.s32 %v175, 1
        %v241 = vsub.s32 %v176, 1
        %v242 = vsub.s32 %v177, 1
        %v243 = vsub.s32 %v178, 1
        %v244 = vsub.s32 %v179, 1
        %v245 = vsub.s32 %v180, 1
        %v246 = vsub.s32 %v181, 1
        %v247 = vsub.s32 %v182, 1
        %v248 = vsub.s32 %v183, 1
        %v249 = vsub.s32 %v184, 1
        %v250 = vsub.s32 %v185, 1
        %v251 = vsub.s32 %v186, 1
        %v252 = vsub.s32 %v187, 1
        %v253 = vsel %vm221, 127, %v237
        %v254 = vsel %vm222, 127, %v238
        %v255 = vsel %vm223, 127, %v239
        %v256 = vsel %vm224, 127, %v240
        %v257 = vsel %vm225, 127, %v241
        %v258 = vsel %vm226, 127, %v242
        %v259 = vsel %vm227, 127, %v243
        %v260 = vsel %vm228, 127, %v244
        %v261 = vsel %vm229, 127, %v245
        %v262 = vsel %vm230, 127, %v246
        %v263 = vsel %vm231, 127, %v247
        %v264 = vsel %vm232, 127, %v248
        %v265 = vsel %vm233, 127, %v249
        %v266 = vsel %vm234, 127, %v250
        %v267 = vsel %vm235, 127, %v251
        %v268 = vsel %vm236, 127, %v252
        %vm269 = vcmp.eq.s32.totalorder %v220, %v253
        %vm270 = vcmp.eq.s32.totalorder %v219, %v254
        %vm271 = vcmp.eq.s32.totalorder %v218, %v255
        %vm272 = vcmp.eq.s32.totalorder %v217, %v256
        %vm273 = vcmp.eq.s32.totalorder %v216, %v257
        %vm274 = vcmp.eq.s32.totalorder %v215, %v258
        %vm275 = vcmp.eq.s32.totalorder %v214, %v259
        %vm276 = vcmp.eq.s32.totalorder %v213, %v260
        %vm277 = vcmp.eq.s32.totalorder %v212, %v261
        %vm278 = vcmp.eq.s32.totalorder %v211, %v262
        %vm279 = vcmp.eq.s32.totalorder %v210, %v263
        %vm280 = vcmp.eq.s32.totalorder %v209, %v264
        %vm281 = vcmp.eq.s32.totalorder %v208, %v265
        %vm282 = vcmp.eq.s32.totalorder %v207, %v266
        %vm283 = vcmp.eq.s32.totalorder %v206, %v267
        %vm284 = vcmp.eq.s32.totalorder %v205, %v268
        %v285 = vrot.slane %v155, 7
        %v286 = vrot.slane %v156, 7
        %v287 = vrot.slane %v157, 7
        %v288 = vrot.slane %v158, 7
        %v289 = vrot.slane %v159, 7
        %v290 = vrot.slane %v160, 7
        %v291 = vrot.slane %v161, 7
        %v292 = vrot.slane %v162, 7
        %v293 = vrot.slane %v163, 7
        %v294 = vrot.slane %v164, 7
        %v295 = vrot.slane %v165, 7
        %v296 = vrot.slane %v166, 7
        %v297 = vrot.slane %v167, 7
        %v298 = vrot.slane %v168, 7
        %v299 = vrot.slane %v169, 7
        %v300 = vrot.slane %v170, 7
        %v301 = vsel %vm204, %v299, %v300
        %v302 = vsel %vm204, %v298, %v299
        %v303 = vsel %vm204, %v297, %v298
        %v304 = vsel %vm204, %v296, %v297
        %v305 = vsel %vm204, %v295, %v296
        %v306 = vsel %vm204, %v294, %v295
        %v307 = vsel %vm204, %v293, %v294
        %v308 = vsel %vm204, %v292, %v293
        %v309 = vsel %vm204, %v291, %v292
        %v310 = vsel %vm204, %v290, %v291
        %v311 = vsel %vm204, %v289, %v290
        %v312 = vsel %vm204, %v288, %v289
        %v313 = vsel %vm204, %v287, %v288
        %v314 = vsel %vm204, %v286, %v287
        %v315 = vsel %vm204, %v285, %v286
        %v316 = vsel %vm204, %v300, %v285
        %v317 = vrot.slane %v155, 1
        %v318 = vrot.slane %v156, 1
        %v319 = vrot.slane %v157, 1
        %v320 = vrot.slane %v158, 1
        %v321 = vrot.slane %v159, 1
        %v322 = vrot.slane %v160, 1
        %v323 = vrot.slane %v161, 1
        %v324 = vrot.slane %v162, 1
        %v325 = vrot.slane %v163, 1
        %v326 = vrot.slane %v164, 1
        %v327 = vrot.slane %v165, 1
        %v328 = vrot.slane %v166, 1
        %v329 = vrot.slane %v167, 1
        %v330 = vrot.slane %v168, 1
        %v331 = vrot.slane %v169, 1
        %v332 = vrot.slane %v170, 1
        %vm333 = vcmp.lt.s32.totalorder %v172, 7
        %v334 = vsel %vm333, %v331, %v332
        %v335 = vsel %vm333, %v330, %v331
        %v336 = vsel %vm333, %v329, %v330
        %v337 = vsel %vm333, %v328, %v329
        %v338 = vsel %vm333, %v327, %v328
        %v339 = vsel %vm333, %v326, %v327
        %v340 = vsel %vm333, %v325, %v326
        %v341 = vsel %vm333, %v324, %v325
        %v342 = vsel %vm333, %v323, %v324
        %v343 = vsel %vm333, %v322, %v323
        %v344 = vsel %vm333, %v321, %v322
        %v345 = vsel %vm333, %v320, %v321
        %v346 = vsel %vm333, %v319, %v320
        %v347 = vsel %vm333, %v318, %v319
        %v348 = vsel %vm333, %v317, %v318
        %v349 = vsel %vm333, %v332, %v317
        %v350 = vsel %vm269, %v316, %v348
        %v351 = vsel %vm270, %v315, %v347
        %v352 = vsel %vm271, %v314, %v346
        %v353 = vsel %vm272, %v313, %v345
        %v354 = vsel %vm273, %v312, %v344
        %v355 = vsel %vm274, %v311, %v343
        %v356 = vsel %vm275, %v310, %v342
        %v357 = vsel %vm276, %v309, %v341
        %v358 = vsel %vm277, %v308, %v340
        %v359 = vsel %vm278, %v307, %v339
        %v360 = vsel %vm279, %v306, %v338
        %v361 = vsel %vm280, %v305, %v337
        %v362 = vsel %vm281, %v304, %v336
        %v363 = vsel %vm282, %v303, %v335
        %v364 = vsel %vm283, %v302, %v334
        %v365 = vsel %vm284, %v301, %v349
        %vm366 = vcmp.ge.s32.totalorder %v172, 1
        %vm367 = vcmp.ge.s32.totalorder %v173, 1
        %vm368 = vcmp.ge.s32.totalorder %v174, 1
        %vm369 = vcmp.ge.s32.totalorder %v175, 1
        %vm370 = vcmp.ge.s32.totalorder %v176, 1
        %vm371 = vcmp.ge.s32.totalorder %v177, 1
        %vm372 = vcmp.ge.s32.totalorder %v178, 1
        %vm373 = vcmp.ge.s32.totalorder %v179, 1
        %vm374 = vcmp.ge.s32.totalorder %v180, 1
        %vm375 = vcmp.ge.s32.totalorder %v181, 1
        %vm376 = vcmp.ge.s32.totalorder %v182, 1
        %vm377 = vcmp.ge.s32.totalorder %v183, 1
        %vm378 = vcmp.ge.s32.totalorder %v184, 1
        %vm379 = vcmp.ge.s32.totalorder %v185, 1
        %vm380 = vcmp.ge.s32.totalorder %v186, 1
        %vm381 = vcmp.ge.s32.totalorder %v187, 1
        %v382 = vsel %vm366, %v350, 0.0
        %v383 = vsel %vm367, %v351, 0.0
        %v384 = vsel %vm368, %v352, 0.0
        %v385 = vsel %vm369, %v353, 0.0
        %v386 = vsel %vm370, %v354, 0.0
        %v387 = vsel %vm371, %v355, 0.0
        %v388 = vsel %vm372, %v356, 0.0
        %v389 = vsel %vm373, %v357, 0.0
        %v390 = vsel %vm374, %v358, 0.0
        %v391 = vsel %vm375, %v359, 0.0
        %v392 = vsel %vm376, %v360, 0.0
        %v393 = vsel %vm377, %v361, 0.0
        %v394 = vsel %vm378, %v362, 0.0
        %v395 = vsel %vm379, %v363, 0.0
        %v396 = vsel %vm380, %v364, 0.0
        %v397 = vsel %vm381, %v365, 0.0
        %v398 = vadd.f32 %v155, %v382
        %v399 = vadd.f32 %v156, %v383
        %v400 = vadd.f32 %v157, %v384
        %v401 = vadd.f32 %v158, %v385
        %v402 = vadd.f32 %v159, %v386
        %v403 = vadd.f32 %v160, %v387
        %v404 = vadd.f32 %v161, %v388
        %v405 = vadd.f32 %v162, %v389
        %v406 = vadd.f32 %v163, %v390
        %v407 = vadd.f32 %v164, %v391
        %v408 = vadd.f32 %v165, %v392
        %v409 = vadd.f32 %v166, %v393
        %v410 = vadd.f32 %v167, %v394
        %v411 = vadd.f32 %v168, %v395
        %v412 = vadd.f32 %v169, %v396
        %v413 = vadd.f32 %v170, %v397
        %v414 = vrot.slane %v398, 6
        %v415 = vrot.slane %v399, 6
        %v416 = vrot.slane %v400, 6
        %v417 = vrot.slane %v401, 6
        %v418 = vrot.slane %v402, 6
        %v419 = vrot.slane %v403, 6
        %v420 = vrot.slane %v404, 6
        %v421 = vrot.slane %v405, 6
        %v422 = vrot.slane %v406, 6
        %v423 = vrot.slane %v407, 6
        %v424 = vrot.slane %v408, 6
        %v425 = vrot.slane %v409, 6
        %v426 = vrot.slane %v410, 6
        %v427 = vrot.slane %v411, 6
        %v428 = vrot.slane %v412, 6
        %v429 = vrot.slane %v413, 6
        %vm430 = vcmp.lt.s32.totalorder %v172, 2
        %v431 = vsel %vm430, %v428, %v429
        %v432 = vsel %vm430, %v427, %v428
        %v433 = vsel %vm430, %v426, %v427
        %v434 = vsel %vm430, %v425, %v426
        %v435 = vsel %vm430, %v424, %v425
        %v436 = vsel %vm430, %v423, %v424
        %v437 = vsel %vm430, %v422, %v423
        %v438 = vsel %vm430, %v421, %v422
        %v439 = vsel %vm430, %v420, %v421
        %v440 = vsel %vm430, %v419, %v420
        %v441 = vsel %vm430, %v418, %v419
        %v442 = vsel %vm430, %v417, %v418
        %v443 = vsel %vm430, %v416, %v417
        %v444 = vsel %vm430, %v415, %v416
        %v445 = vsel %vm430, %v414, %v415
        %v446 = vsel %vm430, %v429, %v414
        %v447 = vrot.slane %v398, 2
        %v448 = vrot.slane %v399, 2
        %v449 = vrot.slane %v400, 2
        %v450 = vrot.slane %v401, 2
        %v451 = vrot.slane %v402, 2
        %v452 = vrot.slane %v403, 2
        %v453 = vrot.slane %v404, 2
        %v454 = vrot.slane %v405, 2
        %v455 = vrot.slane %v406, 2
        %v456 = vrot.slane %v407, 2
        %v457 = vrot.slane %v408, 2
        %v458 = vrot.slane %v409, 2
        %v459 = vrot.slane %v410, 2
        %v460 = vrot.slane %v411, 2
        %v461 = vrot.slane %v412, 2
        %v462 = vrot.slane %v413, 2
        %vm463 = vcmp.lt.s32.totalorder %v172, 6
        %v464 = vsel %vm463, %v461, %v462
        %v465 = vsel %vm463, %v460, %v461
        %v466 = vsel %vm463, %v459, %v460
        %v467 = vsel %vm463, %v458, %v459
        %v468 = vsel %vm463, %v457, %v458
        %v469 = vsel %vm463, %v456, %v457
        %v470 = vsel %vm463, %v455, %v456
        %v471 = vsel %vm463, %v454, %v455
        %v472 = vsel %vm463, %v453, %v454
        %v473 = vsel %vm463, %v452, %v453
        %v474 = vsel %vm463, %v451, %v452
        %v475 = vsel %vm463, %v450, %v451
        %v476 = vsel %vm463, %v449, %v450
        %v477 = vsel %vm463, %v448, %v449
        %v478 = vsel %vm463, %v447, %v448
        %v479 = vsel %vm463, %v462, %v447
        %v480 = vsel %vm269, %v446, %v478
        %v481 = vsel %vm270, %v445, %v477
        %v482 = vsel %vm271, %v444, %v476
        %v483 = vsel %vm272, %v443, %v475
        %v484 = vsel %vm273, %v442, %v474
        %v485 = vsel %vm274, %v441, %v473
        %v486 = vsel %vm275, %v440, %v472
        %v487 = vsel %vm276, %v439, %v471
        %v488 = vsel %vm277, %v438, %v470
        %v489 = vsel %vm278, %v437, %v469
        %v490 = vsel %vm279, %v436, %v468
        %v491 = vsel %vm280, %v435, %v467
        %v492 = vsel %vm281, %v434, %v466
        %v493 = vsel %vm282, %v433, %v465
        %v494 = vsel %vm283, %v432, %v464
        %v495 = vsel %vm284, %v431, %v479
        %vm496 = vcmp.ge.s32.totalorder %v172, 2
        %vm497 = vcmp.ge.s32.totalorder %v173, 2
        %vm498 = vcmp.ge.s32.totalorder %v174, 2
        %vm499 = vcmp.ge.s32.totalorder %v175, 2
        %vm500 = vcmp.ge.s32.totalorder %v176, 2
        %vm501 = vcmp.ge.s32.totalorder %v177, 2
        %vm502 = vcmp.ge.s32.totalorder %v178, 2
        %vm503 = vcmp.ge.s32.totalorder %v179, 2
        %vm504 = vcmp.ge.s32.totalorder %v180, 2
        %vm505 = vcmp.ge.s32.totalorder %v181, 2
        %vm506 = vcmp.ge.s32.totalorder %v182, 2
        %vm507 = vcmp.ge.s32.totalorder %v183, 2
        %vm508 = vcmp.ge.s32.totalorder %v184, 2
        %vm509 = vcmp.ge.s32.totalorder %v185, 2
        %vm510 = vcmp.ge.s32.totalorder %v186, 2
        %vm511 = vcmp.ge.s32.totalorder %v187, 2
        %v512 = vsel %vm496, %v480, 0.0
        %v513 = vsel %vm497, %v481, 0.0
        %v514 = vsel %vm498, %v482, 0.0
        %v515 = vsel %vm499, %v483, 0.0
        %v516 = vsel %vm500, %v484, 0.0
        %v517 = vsel %vm501, %v485, 0.0
        %v518 = vsel %vm502, %v486, 0.0
        %v519 = vsel %vm503, %v487, 0.0
        %v520 = vsel %vm504, %v488, 0.0
        %v521 = vsel %vm505, %v489, 0.0
        %v522 = vsel %vm506, %v490, 0.0
        %v523 = vsel %vm507, %v491, 0.0
        %v524 = vsel %vm508, %v492, 0.0
        %v525 = vsel %vm509, %v493, 0.0
        %v526 = vsel %vm510, %v494, 0.0
        %v527 = vsel %vm511, %v495, 0.0
        %v528 = vadd.f32 %v398, %v512
        %v529 = vadd.f32 %v399, %v513
        %v530 = vadd.f32 %v400, %v514
        %v531 = vadd.f32 %v401, %v515
        %v532 = vadd.f32 %v402, %v516
        %v533 = vadd.f32 %v403, %v517
        %v534 = vadd.f32 %v404, %v518
        %v535 = vadd.f32 %v405, %v519
        %v536 = vadd.f32 %v406, %v520
        %v537 = vadd.f32 %v407, %v521
        %v538 = vadd.f32 %v408, %v522
        %v539 = vadd.f32 %v409, %v523
        %v540 = vadd.f32 %v410, %v524
        %v541 = vadd.f32 %v411, %v525
        %v542 = vadd.f32 %v412, %v526
        %v543 = vadd.f32 %v413, %v527
        %v544 = vrot.slane %v528, 4
        %v545 = vrot.slane %v529, 4
        %v546 = vrot.slane %v530, 4
        %v547 = vrot.slane %v531, 4
        %v548 = vrot.slane %v532, 4
        %v549 = vrot.slane %v533, 4
        %v550 = vrot.slane %v534, 4
        %v551 = vrot.slane %v535, 4
        %v552 = vrot.slane %v536, 4
        %v553 = vrot.slane %v537, 4
        %v554 = vrot.slane %v538, 4
        %v555 = vrot.slane %v539, 4
        %v556 = vrot.slane %v540, 4
        %v557 = vrot.slane %v541, 4
        %v558 = vrot.slane %v542, 4
        %v559 = vrot.slane %v543, 4
        %vm560 = vcmp.lt.s32.totalorder %v172, 4
        %v561 = vsel %vm560, %v558, %v559
        %v562 = vsel %vm560, %v557, %v558
        %v563 = vsel %vm560, %v556, %v557
        %v564 = vsel %vm560, %v555, %v556
        %v565 = vsel %vm560, %v554, %v555
        %v566 = vsel %vm560, %v553, %v554
        %v567 = vsel %vm560, %v552, %v553
        %v568 = vsel %vm560, %v551, %v552
        %v569 = vsel %vm560, %v550, %v551
        %v570 = vsel %vm560, %v549, %v550
        %v571 = vsel %vm560, %v548, %v549
        %v572 = vsel %vm560, %v547, %v548
        %v573 = vsel %vm560, %v546, %v547
        %v574 = vsel %vm560, %v545, %v546
        %v575 = vsel %vm560, %v544, %v545
        %v576 = vsel %vm560, %v559, %v544
        %v577 = vsel %vm269, %v576, %v575
        %v578 = vsel %vm270, %v575, %v574
        %v579 = vsel %vm271, %v574, %v573
        %v580 = vsel %vm272, %v573, %v572
        %v581 = vsel %vm273, %v572, %v571
        %v582 = vsel %vm274, %v571, %v570
        %v583 = vsel %vm275, %v570, %v569
        %v584 = vsel %vm276, %v569, %v568
        %v585 = vsel %vm277, %v568, %v567
        %v586 = vsel %vm278, %v567, %v566
        %v587 = vsel %vm279, %v566, %v565
        %v588 = vsel %vm280, %v565, %v564
        %v589 = vsel %vm281, %v564, %v563
        %v590 = vsel %vm282, %v563, %v562
        %v591 = vsel %vm283, %v562, %v561
        %v592 = vsel %vm284, %v561, %v576
        %vm593 = vcmp.ge.s32.totalorder %v172, 4
        %vm594 = vcmp.ge.s32.totalorder %v173, 4
        %vm595 = vcmp.ge.s32.totalorder %v174, 4
        %vm596 = vcmp.ge.s32.totalorder %v175, 4
        %vm597 = vcmp.ge.s32.totalorder %v176, 4
        %vm598 = vcmp.ge.s32.totalorder %v177, 4
        %vm599 = vcmp.ge.s32.totalorder %v178, 4
        %vm600 = vcmp.ge.s32.totalorder %v179, 4
        %vm601 = vcmp.ge.s32.totalorder %v180, 4
        %vm602 = vcmp.ge.s32.totalorder %v181, 4
        %vm603 = vcmp.ge.s32.totalorder %v182, 4
        %vm604 = vcmp.ge.s32.totalorder %v183, 4
        %vm605 = vcmp.ge.s32.totalorder %v184, 4
        %vm606 = vcmp.ge.s32.totalorder %v185, 4
        %vm607 = vcmp.ge.s32.totalorder %v186, 4
        %vm608 = vcmp.ge.s32.totalorder %v187, 4
        %v609 = vsel %vm593, %v577, 0.0
        %v610 = vsel %vm594, %v578, 0.0
        %v611 = vsel %vm595, %v579, 0.0
        %v612 = vsel %vm596, %v580, 0.0
        %v613 = vsel %vm597, %v581, 0.0
        %v614 = vsel %vm598, %v582, 0.0
        %v615 = vsel %vm599, %v583, 0.0
        %v616 = vsel %vm600, %v584, 0.0
        %v617 = vsel %vm601, %v585, 0.0
        %v618 = vsel %vm602, %v586, 0.0
        %v619 = vsel %vm603, %v587, 0.0
        %v620 = vsel %vm604, %v588, 0.0
        %v621 = vsel %vm605, %v589, 0.0
        %v622 = vsel %vm606, %v590, 0.0
        %v623 = vsel %vm607, %v591, 0.0
        %v624 = vsel %vm608, %v592, 0.0
        %v625 = vadd.f32 %v528, %v609
        %v626 = vadd.f32 %v529, %v610
        %v627 = vadd.f32 %v530, %v611
        %v628 = vadd.f32 %v531, %v612
        %v629 = vadd.f32 %v532, %v613
        %v630 = vadd.f32 %v533, %v614
        %v631 = vadd.f32 %v534, %v615
        %v632 = vadd.f32 %v535, %v616
        %v633 = vadd.f32 %v536, %v617
        %v634 = vadd.f32 %v537, %v618
        %v635 = vadd.f32 %v538, %v619
        %v636 = vadd.f32 %v539, %v620
        %v637 = vadd.f32 %v540, %v621
        %v638 = vadd.f32 %v541, %v622
        %v639 = vadd.f32 %v542, %v623
        %v640 = vadd.f32 %v543, %v624
        %v641 = vsel %vm269, %v640, %v626
        %v642 = vsel %vm270, %v625, %v627
        %v643 = vsel %vm271, %v626, %v628
        %v644 = vsel %vm272, %v627, %v629
        %v645 = vsel %vm273, %v628, %v630
        %v646 = vsel %vm274, %v629, %v631
        %v647 = vsel %vm275, %v630, %v632
        %v648 = vsel %vm276, %v631, %v633
        %v649 = vsel %vm277, %v632, %v634
        %v650 = vsel %vm278, %v633, %v635
        %v651 = vsel %vm279, %v634, %v636
        %v652 = vsel %vm280, %v635, %v637
        %v653 = vsel %vm281, %v636, %v638
        %v654 = vsel %vm282, %v637, %v639
        %v655 = vsel %vm283, %v638, %v640
        %v656 = vsel %vm284, %v639, %v625
        %vm657 = vcmp.ge.s32.totalorder %v172, 8
        %vm658 = vcmp.ge.s32.totalorder %v173, 8
        %vm659 = vcmp.ge.s32.totalorder %v174, 8
        %vm660 = vcmp.ge.s32.totalorder %v175, 8
        %vm661 = vcmp.ge.s32.totalorder %v176, 8
        %vm662 = vcmp.ge.s32.totalorder %v177, 8
        %vm663 = vcmp.ge.s32.totalorder %v178, 8
        %vm664 = vcmp.ge.s32.totalorder %v179, 8
        %vm665 = vcmp.ge.s32.totalorder %v180, 8
        %vm666 = vcmp.ge.s32.totalorder %v181, 8
        %vm667 = vcmp.ge.s32.totalorder %v182, 8
        %vm668 = vcmp.ge.s32.totalorder %v183, 8
        %vm669 = vcmp.ge.s32.totalorder %v184, 8
        %vm670 = vcmp.ge.s32.totalorder %v185, 8
        %vm671 = vcmp.ge.s32.totalorder %v186, 8
        %vm672 = vcmp.ge.s32.totalorder %v187, 8
        %v673 = vsel %vm657, %v641, 0.0
        %v674 = vsel %vm658, %v642, 0.0
        %v675 = vsel %vm659, %v643, 0.0
        %v676 = vsel %vm660, %v644, 0.0
        %v677 = vsel %vm661, %v645, 0.0
        %v678 = vsel %vm662, %v646, 0.0
        %v679 = vsel %vm663, %v647, 0.0
        %v680 = vsel %vm664, %v648, 0.0
        %v681 = vsel %vm665, %v649, 0.0
        %v682 = vsel %vm666, %v650, 0.0
        %v683 = vsel %vm667, %v651, 0.0
        %v684 = vsel %vm668, %v652, 0.0
        %v685 = vsel %vm669, %v653, 0.0
        %v686 = vsel %vm670, %v654, 0.0
        %v687 = vsel %vm671, %v655, 0.0
        %v688 = vsel %vm672, %v656, 0.0
        %v689 = vadd.f32 %v625, %v673
        %v690 = vadd.f32 %v626, %v674
        %v691 = vadd.f32 %v627, %v675
        %v692 = vadd.f32 %v628, %v676
        %v693 = vadd.f32 %v629, %v677
        %v694 = vadd.f32 %v630, %v678
        %v695 = vadd.f32 %v631, %v679
        %v696 = vadd.f32 %v632, %v680
        %v697 = vadd.f32 %v633, %v681
        %v698 = vadd.f32 %v634, %v682
        %v699 = vadd.f32 %v635, %v683
        %v700 = vadd.f32 %v636, %v684
        %v701 = vadd.f32 %v637, %v685
        %v702 = vadd.f32 %v638, %v686
        %v703 = vadd.f32 %v639, %v687
        %v704 = vadd.f32 %v640, %v688
        %v705 = vsel %vm269, %v703, %v691
        %v706 = vsel %vm270, %v704, %v692
        %v707 = vsel %vm271, %v689, %v693
        %v708 = vsel %vm272, %v690, %v694
        %v709 = vsel %vm273, %v691, %v695
        %v710 = vsel %vm274, %v692, %v696
        %v711 = vsel %vm275, %v693, %v697
        %v712 = vsel %vm276, %v694, %v698
        %v713 = vsel %vm277, %v695, %v699
        %v714 = vsel %vm278, %v696, %v700
        %v715 = vsel %vm279, %v697, %v701
        %v716 = vsel %vm280, %v698, %v702
        %v717 = vsel %vm281, %v699, %v703
        %v718 = vsel %vm282, %v700, %v704
        %v719 = vsel %vm283, %v701, %v689
        %v720 = vsel %vm284, %v702, %v690
        %vm721 = vcmp.ge.s32.totalorder %v172, 16
        %vm722 = vcmp.ge.s32.totalorder %v173, 16
        %vm723 = vcmp.ge.s32.totalorder %v174, 16
        %vm724 = vcmp.ge.s32.totalorder %v175, 16
        %vm725 = vcmp.ge.s32.totalorder %v176, 16
        %vm726 = vcmp.ge.s32.totalorder %v177, 16
        %vm727 = vcmp.ge.s32.totalorder %v178, 16
        %vm728 = vcmp.ge.s32.totalorder %v179, 16
        %vm729 = vcmp.ge.s32.totalorder %v180, 16
        %vm730 = vcmp.ge.s32.totalorder %v181, 16
        %vm731 = vcmp.ge.s32.totalorder %v182, 16
        %vm732 = vcmp.ge.s32.totalorder %v183, 16
        %vm733 = vcmp.ge.s32.totalorder %v184, 16
        %vm734 = vcmp.ge.s32.totalorder %v185, 16
        %vm735 = vcmp.ge.s32.totalorder %v186, 16
        %vm736 = vcmp.ge.s32.totalorder %v187, 16
        %v737 = vsel %vm721, %v705, 0.0
        %v738 = vsel %vm722, %v706, 0.0
        %v739 = vsel %vm723, %v707, 0.0
        %v740 = vsel %vm724, %v708, 0.0
        %v741 = vsel %vm725, %v709, 0.0
        %v742 = vsel %vm726, %v710, 0.0
        %v743 = vsel %vm727, %v711, 0.0
        %v744 = vsel %vm728, %v712, 0.0
        %v745 = vsel %vm729, %v713, 0.0
        %v746 = vsel %vm730, %v714, 0.0
        %v747 = vsel %vm731, %v715, 0.0
        %v748 = vsel %vm732, %v716, 0.0
        %v749 = vsel %vm733, %v717, 0.0
        %v750 = vsel %vm734, %v718, 0.0
        %v751 = vsel %vm735, %v719, 0.0
        %v752 = vsel %vm736, %v720, 0.0
        %v753 = vadd.f32 %v689, %v737
        %v754 = vadd.f32 %v690, %v738
        %v755 = vadd.f32 %v691, %v739
        %v756 = vadd.f32 %v692, %v740
        %v757 = vadd.f32 %v693, %v741
        %v758 = vadd.f32 %v694, %v742
        %v759 = vadd.f32 %v695, %v743
        %v760 = vadd.f32 %v696, %v744
        %v761 = vadd.f32 %v697, %v745
        %v762 = vadd.f32 %v698, %v746
        %v763 = vadd.f32 %v699, %v747
        %v764 = vadd.f32 %v700, %v748
        %v765 = vadd.f32 %v701, %v749
        %v766 = vadd.f32 %v702, %v750
        %v767 = vadd.f32 %v703, %v751
        %v768 = vadd.f32 %v704, %v752
        %v769 = vsel %vm269, %v765, %v757
        %v770 = vsel %vm270, %v766, %v758
        %v771 = vsel %vm271, %v767, %v759
        %v772 = vsel %vm272, %v768, %v760
        %v773 = vsel %vm273, %v753, %v761
        %v774 = vsel %vm274, %v754, %v762
        %v775 = vsel %vm275, %v755, %v763
        %v776 = vsel %vm276, %v756, %v764
        %v777 = vsel %vm277, %v757, %v765
        %v778 = vsel %vm278, %v758, %v766
        %v779 = vsel %vm279, %v759, %v767
        %v780 = vsel %vm280, %v760, %v768
        %v781 = vsel %vm281, %v761, %v753
        %v782 = vsel %vm282, %v762, %v754
        %v783 = vsel %vm283, %v763, %v755
        %v784 = vsel %vm284, %v764, %v756
        %vm785 = vcmp.ge.s32.totalorder %v172, 32
        %vm786 = vcmp.ge.s32.totalorder %v173, 32
        %vm787 = vcmp.ge.s32.totalorder %v174, 32
        %vm788 = vcmp.ge.s32.totalorder %v175, 32
        %vm789 = vcmp.ge.s32.totalorder %v176, 32
        %vm790 = vcmp.ge.s32.totalorder %v177, 32
        %vm791 = vcmp.ge.s32.totalorder %v178, 32
        %vm792 = vcmp.ge.s32.totalorder %v179, 32
        %vm793 = vcmp.ge.s32.totalorder %v180, 32
        %vm794 = vcmp.ge.s32.totalorder %v181, 32
        %vm795 = vcmp.ge.s32.totalorder %v182, 32
        %vm796 = vcmp.ge.s32.totalorder %v183, 32
        %vm797 = vcmp.ge.s32.totalorder %v184, 32
        %vm798 = vcmp.ge.s32.totalorder %v185, 32
        %vm799 = vcmp.ge.s32.totalorder %v186, 32
        %vm800 = vcmp.ge.s32.totalorder %v187, 32
        %v801 = vsel %vm785, %v769, 0.0
        %v802 = vsel %vm786, %v770, 0.0
        %v803 = vsel %vm787, %v771, 0.0
        %v804 = vsel %vm788, %v772, 0.0
        %v805 = vsel %vm789, %v773, 0.0
        %v806 = vsel %vm790, %v774, 0.0
        %v807 = vsel %vm791, %v775, 0.0
        %v808 = vsel %vm792, %v776, 0.0
        %v809 = vsel %vm793, %v777, 0.0
        %v810 = vsel %vm794, %v778, 0.0
        %v811 = vsel %vm795, %v779, 0.0
        %v812 = vsel %vm796, %v780, 0.0
        %v813 = vsel %vm797, %v781, 0.0
        %v814 = vsel %vm798, %v782, 0.0
        %v815 = vsel %vm799, %v783, 0.0
        %v816 = vsel %vm800, %v784, 0.0
        %v817 = vadd.f32 %v753, %v801
        %v818 = vadd.f32 %v754, %v802
        %v819 = vadd.f32 %v755, %v803
        %v820 = vadd.f32 %v756, %v804
        %v821 = vadd.f32 %v757, %v805
        %v822 = vadd.f32 %v758, %v806
        %v823 = vadd.f32 %v759, %v807
        %v824 = vadd.f32 %v760, %v808
        %v825 = vadd.f32 %v761, %v809
        %v826 = vadd.f32 %v762, %v810
        %v827 = vadd.f32 %v763, %v811
        %v828 = vadd.f32 %v764, %v812
        %v829 = vadd.f32 %v765, %v813
        %v830 = vadd.f32 %v766, %v814
        %v831 = vadd.f32 %v767, %v815
        %v832 = vadd.f32 %v768, %v816
        %vm833 = vcmp.ge.s32.totalorder %v172, 64
        %vm834 = vcmp.ge.s32.totalorder %v173, 64
        %vm835 = vcmp.ge.s32.totalorder %v174, 64
        %vm836 = vcmp.ge.s32.totalorder %v175, 64
        %vm837 = vcmp.ge.s32.totalorder %v176, 64
        %vm838 = vcmp.ge.s32.totalorder %v177, 64
        %vm839 = vcmp.ge.s32.totalorder %v178, 64
        %vm840 = vcmp.ge.s32.totalorder %v179, 64
        %vm841 = vcmp.ge.s32.totalorder %v180, 64
        %vm842 = vcmp.ge.s32.totalorder %v181, 64
        %vm843 = vcmp.ge.s32.totalorder %v182, 64
        %vm844 = vcmp.ge.s32.totalorder %v183, 64
        %vm845 = vcmp.ge.s32.totalorder %v184, 64
        %vm846 = vcmp.ge.s32.totalorder %v185, 64
        %vm847 = vcmp.ge.s32.totalorder %v186, 64
        %vm848 = vcmp.ge.s32.totalorder %v187, 64
        %v849 = vsel %vm833, %v825, 0.0
        %v850 = vsel %vm834, %v826, 0.0
        %v851 = vsel %vm835, %v827, 0.0
        %v852 = vsel %vm836, %v828, 0.0
        %v853 = vsel %vm837, %v829, 0.0
        %v854 = vsel %vm838, %v830, 0.0
        %v855 = vsel %vm839, %v831, 0.0
        %v856 = vsel %vm840, %v832, 0.0
        %v857 = vsel %vm841, %v817, 0.0
        %v858 = vsel %vm842, %v818, 0.0
        %v859 = vsel %vm843, %v819, 0.0
        %v860 = vsel %vm844, %v820, 0.0
        %v861 = vsel %vm845, %v821, 0.0
        %v862 = vsel %vm846, %v822, 0.0
        %v863 = vsel %vm847, %v823, 0.0
        %v864 = vsel %vm848, %v824, 0.0
        %v865 = vadd.f32 %v817, %v849
        %v866 = vadd.f32 %v818, %v850
        %v867 = vadd.f32 %v819, %v851
        %v868 = vadd.f32 %v820, %v852
        %v869 = vadd.f32 %v821, %v853
        %v870 = vadd.f32 %v822, %v854
        %v871 = vadd.f32 %v823, %v855
        %v872 = vadd.f32 %v824, %v856
        %v873 = vadd.f32 %v825, %v857
        %v874 = vadd.f32 %v826, %v858
        %v875 = vadd.f32 %v827, %v859
        %v876 = vadd.f32 %v828, %v860
        %v877 = vadd.f32 %v829, %v861
        %v878 = vadd.f32 %v830, %v862
        %v879 = vadd.f32 %v831, %v863
        %v880 = vadd.f32 %v832, %v864
        %vm881 = vcmask 7168
        %v882 = vsel %vm881, %v865, -inf
        %v883 = vsel %vm881, %v866, -inf
        %v884 = vsel %vm881, %v867, -inf
        %v885 = vsel %vm881, %v868, -inf
        %v886 = vsel %vm881, %v869, -inf
        %v887 = vmax.f32 %v882, %v886
        %v888 = vsel %vm881, %v870, -inf
        %v889 = vmax.f32 %v883, %v888
        %v890 = vsel %vm881, %v871, -inf
        %v891 = vmax.f32 %v884, %v890
        %v892 = vsel %vm881, %v872, -inf
        %v893 = vmax.f32 %v885, %v892
        %v894 = vsel %vm881, %v873, -inf
        %v895 = vmax.f32 %v887, %v894
        %v896 = vsel %vm881, %v874, -inf
        %v897 = vmax.f32 %v889, %v896
        %v898 = vsel %vm881, %v875, -inf
        %v899 = vmax.f32 %v891, %v898
        %v900 = vsel %vm881, %v876, -inf
        %v901 = vmax.f32 %v893, %v900
        %v902 = vsel %vm881, %v877, -inf
        %v903 = vmax.f32 %v895, %v902
        %v904 = vsel %vm881, %v878, -inf
        %v905 = vmax.f32 %v897, %v904
        %v906 = vsel %vm881, %v879, -inf
        %v907 = vmax.f32 %v899, %v906
        %v908 = vsel %vm881, %v880, -inf
        %v909 = vmax.f32 %v901, %v908
        %v910 = vmax.f32 %v903, %v905
        %v911 = vmax.f32 %v907, %v909
        %v912 = vmax.f32 %v910, %v911
        %v913 = vrot.slane %v912, 4
        %v914 = vmax.f32 %v912, %v913
        %v915 = vrot.slane %v914, 2
        %v916 = vmax.f32 %v914, %v915
        %v917 = vrot.slane %v916, 1
        %v918 = vmax.f32 %v916, %v917
        %v919 = vld [vmem:[%s154] sm:$0x1]
        %921 = vset.pattern.permute.xlu0 0
        %922 = vperm.xlu0 %921, %v918
        %v923 = vpop.permute.xlu0 %922
        %v925 = vmul.f32 %v919, %v923
        %927 = vset.pattern.permute.xlu0 0
        %928 = vperm.xlu0 %927, %v865
        %v929 = vpop.permute.xlu0 %928
        %932 = vset.pattern.permute.xlu0 0
        %933 = vperm.xlu0 %932, %v866
        %v934 = vpop.permute.xlu0 %933
        %937 = vset.pattern.permute.xlu0 0
        %938 = vperm.xlu0 %937, %v867
        %v939 = vpop.permute.xlu0 %938
        %942 = vset.pattern.permute.xlu0 0
        %943 = vperm.xlu0 %942, %v868
        %v944 = vpop.permute.xlu0 %943
        %947 = vset.pattern.permute.xlu0 0
        %948 = vperm.xlu0 %947, %v869
        %v949 = vpop.permute.xlu0 %948
        %952 = vset.pattern.permute.xlu0 0
        %953 = vperm.xlu0 %952, %v870
        %v954 = vpop.permute.xlu0 %953
        %957 = vset.pattern.permute.xlu0 0
        %958 = vperm.xlu0 %957, %v871
        %v959 = vpop.permute.xlu0 %958
        %962 = vset.pattern.permute.xlu0 0
        %963 = vperm.xlu0 %962, %v872
        %v964 = vpop.permute.xlu0 %963
        %967 = vset.pattern.permute.xlu0 0
        %968 = vperm.xlu0 %967, %v873
        %v969 = vpop.permute.xlu0 %968
        %972 = vset.pattern.permute.xlu0 0
        %973 = vperm.xlu0 %972, %v874
        %v974 = vpop.permute.xlu0 %973
        %977 = vset.pattern.permute.xlu0 0
        %978 = vperm.xlu0 %977, %v875
        %v979 = vpop.permute.xlu0 %978
        %982 = vset.pattern.permute.xlu0 0
        %983 = vperm.xlu0 %982, %v876
        %v984 = vpop.permute.xlu0 %983
        %987 = vset.pattern.permute.xlu0 0
        %988 = vperm.xlu0 %987, %v877
        %v989 = vpop.permute.xlu0 %988
        %992 = vset.pattern.permute.xlu0 0
        %993 = vperm.xlu0 %992, %v878
        %v994 = vpop.permute.xlu0 %993
        %997 = vset.pattern.permute.xlu0 0
        %998 = vperm.xlu0 %997, %v879
        %v999 = vpop.permute.xlu0 %998
        %1002 = vset.pattern.permute.xlu0 0
        %1003 = vperm.xlu0 %1002, %v880
        %v1004 = vpop.permute.xlu0 %1003
        %v1007 = vlaneseq
        %v1008 = vshrl.u32 %v1007, 7
        %v1009 = vsub.s32 0, %v1008
        %v1010 = vrot.slane %v925, %v1009
        %vm1012 = vcmp.le.f32.partialorder %v929, %v1010
        %vm1013 = vcmp.le.f32.partialorder %v934, %v1010
        %vm1014 = vcmp.le.f32.partialorder %v939, %v1010
        %vm1015 = vcmp.le.f32.partialorder %v944, %v1010
        %vm1016 = vcmp.le.f32.partialorder %v949, %v1010
        %vm1017 = vcmp.le.f32.partialorder %v954, %v1010
        %vm1018 = vcmp.le.f32.partialorder %v959, %v1010
        %vm1019 = vcmp.le.f32.partialorder %v964, %v1010
        %vm1020 = vcmp.le.f32.partialorder %v969, %v1010
        %vm1021 = vcmp.le.f32.partialorder %v974, %v1010
        %vm1022 = vcmp.le.f32.partialorder %v979, %v1010
        %vm1023 = vcmp.le.f32.partialorder %v984, %v1010
        %vm1024 = vcmp.le.f32.partialorder %v989, %v1010
        %vm1025 = vcmp.le.f32.partialorder %v994, %v1010
        %vm1026 = vcmp.le.f32.partialorder %v999, %v1010
        %vm1027 = vcmp.le.f32.partialorder %v1004, %v1010
        %vm1028 = vcmp.lt.f32.partialorder %v865, %v918
        %vm1029 = vcmp.lt.f32.partialorder %v866, %v918
        %vm1030 = vcmp.lt.f32.partialorder %v867, %v918
        %vm1031 = vcmp.lt.f32.partialorder %v868, %v918
        %vm1032 = vcmp.lt.f32.partialorder %v869, %v918
        %vm1033 = vcmp.lt.f32.partialorder %v870, %v918
        %vm1034 = vcmp.lt.f32.partialorder %v871, %v918
        %vm1035 = vcmp.lt.f32.partialorder %v872, %v918
        %vm1036 = vcmp.lt.f32.partialorder %v873, %v918
        %vm1037 = vcmp.lt.f32.partialorder %v874, %v918
        %vm1038 = vcmp.lt.f32.partialorder %v875, %v918
        %vm1039 = vcmp.lt.f32.partialorder %v876, %v918
        %vm1040 = vcmp.lt.f32.partialorder %v877, %v918
        %vm1041 = vcmp.lt.f32.partialorder %v878, %v918
        %vm1042 = vcmp.lt.f32.partialorder %v879, %v918
        %vm1043 = vcmp.lt.f32.partialorder %v880, %v918
        %v1044 = vsel %vm1028, 1, 0
        %v1045 = vsel %vm1029, 1, 0
        %v1046 = vsel %vm1030, 1, 0
        %v1047 = vsel %vm1031, 1, 0
        %v1048 = vsel %vm1032, 1, 0
        %v1049 = vsel %vm1033, 1, 0
        %v1050 = vsel %vm1034, 1, 0
        %v1051 = vsel %vm1035, 1, 0
        %v1052 = vsel %vm1036, 1, 0
        %v1053 = vsel %vm1037, 1, 0
        %v1054 = vsel %vm1038, 1, 0
        %v1055 = vsel %vm1039, 1, 0
        %v1056 = vsel %vm1040, 1, 0
        %v1057 = vsel %vm1041, 1, 0
        %v1058 = vsel %vm1042, 1, 0
        %v1059 = vsel %vm1043, 1, 0
        %1060 = vset.pattern.permute.xlu0 0
        %1061 = vperm.xlu0 %1060, %v1044
        %v1062 = vpop.permute.xlu0 %1061
        %1063 = vset.pattern.permute.xlu0 0
        %1064 = vperm.xlu0 %1063, %v1045
        %v1065 = vpop.permute.xlu0 %1064
        %1066 = vset.pattern.permute.xlu0 0
        %1067 = vperm.xlu0 %1066, %v1046
        %v1068 = vpop.permute.xlu0 %1067
        %1069 = vset.pattern.permute.xlu0 0
        %1070 = vperm.xlu0 %1069, %v1047
        %v1071 = vpop.permute.xlu0 %1070
        %1072 = vset.pattern.permute.xlu0 0
        %1073 = vperm.xlu0 %1072, %v1048
        %v1074 = vpop.permute.xlu0 %1073
        %1075 = vset.pattern.permute.xlu0 0
        %1076 = vperm.xlu0 %1075, %v1049
        %v1077 = vpop.permute.xlu0 %1076
        %1078 = vset.pattern.permute.xlu0 0
        %1079 = vperm.xlu0 %1078, %v1050
        %v1080 = vpop.permute.xlu0 %1079
        %1081 = vset.pattern.permute.xlu0 0
        %1082 = vperm.xlu0 %1081, %v1051
        %v1083 = vpop.permute.xlu0 %1082
        %1084 = vset.pattern.permute.xlu0 0
        %1085 = vperm.xlu0 %1084, %v1052
        %v1086 = vpop.permute.xlu0 %1085
        %1087 = vset.pattern.permute.xlu0 0
        %1088 = vperm.xlu0 %1087, %v1053
        %v1089 = vpop.permute.xlu0 %1088
        %1090 = vset.pattern.permute.xlu0 0
        %1091 = vperm.xlu0 %1090, %v1054
        %v1092 = vpop.permute.xlu0 %1091
        %1093 = vset.pattern.permute.xlu0 0
        %1094 = vperm.xlu0 %1093, %v1055
        %v1095 = vpop.permute.xlu0 %1094
        %1096 = vset.pattern.permute.xlu0 0
        %1097 = vperm.xlu0 %1096, %v1056
        %v1098 = vpop.permute.xlu0 %1097
        %1099 = vset.pattern.permute.xlu0 0
        %1100 = vperm.xlu0 %1099, %v1057
        %v1101 = vpop.permute.xlu0 %1100
        %1102 = vset.pattern.permute.xlu0 0
        %1103 = vperm.xlu0 %1102, %v1058
        %v1104 = vpop.permute.xlu0 %1103
        %1105 = vset.pattern.permute.xlu0 0
        %1106 = vperm.xlu0 %1105, %v1059
        %v1107 = vpop.permute.xlu0 %1106
        %vm1108 = vcmp.eq.s32.totalorder %v1062, 1
        %vm1109 = vcmp.eq.s32.totalorder %v1065, 1
        %vm1110 = vcmp.eq.s32.totalorder %v1068, 1
        %vm1111 = vcmp.eq.s32.totalorder %v1071, 1
        %vm1112 = vcmp.eq.s32.totalorder %v1074, 1
        %vm1113 = vcmp.eq.s32.totalorder %v1077, 1
        %vm1114 = vcmp.eq.s32.totalorder %v1080, 1
        %vm1115 = vcmp.eq.s32.totalorder %v1083, 1
        %vm1116 = vcmp.eq.s32.totalorder %v1086, 1
        %vm1117 = vcmp.eq.s32.totalorder %v1089, 1
        %vm1118 = vcmp.eq.s32.totalorder %v1092, 1
        %vm1119 = vcmp.eq.s32.totalorder %v1095, 1
        %vm1120 = vcmp.eq.s32.totalorder %v1098, 1
        %vm1121 = vcmp.eq.s32.totalorder %v1101, 1
        %vm1122 = vcmp.eq.s32.totalorder %v1104, 1
        %vm1123 = vcmp.eq.s32.totalorder %v1107, 1
        %vm1124 = vmand %vm1012, %vm1108
        %vm1125 = vmand %vm1013, %vm1109
        %vm1126 = vmand %vm1014, %vm1110
        %vm1127 = vmand %vm1015, %vm1111
        %vm1128 = vmand %vm1016, %vm1112
        %vm1129 = vmand %vm1017, %vm1113
        %vm1130 = vmand %vm1018, %vm1114
        %vm1131 = vmand %vm1019, %vm1115
        %vm1132 = vmand %vm1020, %vm1116
        %vm1133 = vmand %vm1021, %vm1117
        %vm1134 = vmand %vm1022, %vm1118
        %vm1135 = vmand %vm1023, %vm1119
        %vm1136 = vmand %vm1024, %vm1120
        %vm1137 = vmand %vm1025, %vm1121
        %vm1138 = vmand %vm1026, %vm1122
        %vm1139 = vmand %vm1027, %vm1123
        %v1140 = vsel %vm1124, 1, 0
        %v1141 = vsel %vm1125, 1, 0
        %v1142 = vsel %vm1126, 1, 0
        %v1143 = vsel %vm1127, 1, 0
        %v1144 = vsel %vm1128, 1, 0
        %v1145 = vsel %vm1129, 1, 0
        %v1146 = vsel %vm1130, 1, 0
        %v1147 = vsel %vm1131, 1, 0
        %v1148 = vsel %vm1132, 1, 0
        %v1149 = vsel %vm1133, 1, 0
        %v1150 = vsel %vm1134, 1, 0
        %v1151 = vsel %vm1135, 1, 0
        %v1152 = vsel %vm1136, 1, 0
        %v1153 = vsel %vm1137, 1, 0
        %v1154 = vsel %vm1138, 1, 0
        %v1155 = vsel %vm1139, 1, 0
        %v1156 = vadd.s32 %v1140, %v1144
        %v1157 = vadd.s32 %v1141, %v1145
        %v1158 = vadd.s32 %v1142, %v1146
        %v1159 = vadd.s32 %v1143, %v1147
        %v1160 = vadd.s32 %v1156, %v1148
        %v1161 = vadd.s32 %v1157, %v1149
        %v1162 = vadd.s32 %v1158, %v1150
        %v1163 = vadd.s32 %v1159, %v1151
        %v1164 = vadd.s32 %v1160, %v1152
        %v1165 = vadd.s32 %v1161, %v1153
        %v1166 = vadd.s32 %v1162, %v1154
        %v1167 = vadd.s32 %v1163, %v1155
        %v1168 = vadd.s32 %v1164, %v1165
        %v1169 = vadd.s32 %v1166, %v1167
        %v1170 = vadd.s32 %v1168, %v1169
        %v1171 = vrot.slane %v1170, 4
        %v1172 = vadd.s32 %v1170, %v1171
        %v1173 = vrot.slane %v1172, 2
        %v1174 = vadd.s32 %v1172, %v1173
        %v1175 = vrot.slane %v1174, 1
        %v1176 = vadd.s32 %v1174, %v1175
        %vm1177 = vcmp.lt.s32.totalorder %v1176, 127
        %v1178 = vsel %vm1177, %v1176, 127
        %1179 = vst [vmem:[%s146] sm:$0x1] %v1178
        %s1180 = sand.u32 %s76, 1
        %s1181 = scalar_lea.sflag [#allocation3], %s1180
        %s1182 = sand.u32 %s76, 1
        %s1183 = scalar_lea.vmem [#allocation2], %s1182
        // Predicated region
        $region29: #{tpu_custom_call.1} parent=27 // pred_check
          %p1184 = pneg %p86
        $region30: #{tpu_custom_call.1} parent=27 // pred_check_branch
          %1186 = sbr.rel (%p1184) target = $region32
        $region31: #{tpu_custom_call.1} parent=27 // pred_region
          %s1188 = ssub.s32 16, 16
          %1189 = vsyncadd %s1181, %s1188
          %s1190 = smul.addr %s16, 16
          %s1191 = scalar_lea.hbm %s2, %s1190
          %s1193 = sshll.u32 %s1183, 4
          %s1194 = int_to_ptr.vmem [resolvable:$true] %s1193
          %1196 = dma.vmem_to_hbm [thread:$0]  %s1194, 16, %s1191, %s1181
        $region32: #{tpu_custom_call.1} parent=27 // pred_fallthru
          _
      $region28: #{tpu_custom_call.1} parent=5 // pred_fallthru
        _
      %p1197 = scmp.le.s32.totalorder 2, %s11
      // Predicated region
      $region33: #{tpu_custom_call.1} parent=5 // pred_check
        %p1198 = pneg %p1197
      $region34: #{tpu_custom_call.1} parent=5 // pred_check_branch
        %1200 = sbr.rel (%p1198) target = $region36
      $region35: #{tpu_custom_call.1} parent=5 // pred_region
        %s1201 = ssub.s32 %s11, 2
        // Predicated region
        $region37: #{tpu_custom_call.1} parent=35 // pred_check
          %p1202 = pneg %p92
        $region38: #{tpu_custom_call.1} parent=35 // pred_check_branch
          %1204 = sbr.rel (%p1202) target = $region40
        $region39: #{tpu_custom_call.1} parent=35 // pred_region
          %s1205 = sand.u32 %s77, 1
          %s1206 = scalar_lea.sflag [#allocation3], %s1205
          %s1207 = sand.u32 %s77, 1
          %s1208 = scalar_lea.vmem [#allocation2], %s1207
          %1209 = dma.done %s1206, 16
        $region40: #{tpu_custom_call.1} parent=35 // pred_fallthru
          _
      $region36: #{tpu_custom_call.1} parent=5 // pred_fallthru
        _
    $region6: #{tpu_custom_call.1} parent=1 // loop_footer
      %s15 = sadd.s32 1, %s11
    $region7: #{tpu_custom_call.1} parent=1 // loop_footer_branch
      %10 = sbr.rel target = $region3
    $region8: #{tpu_custom_call.1} parent=1 // loop_exit
      _
    %1210 = vsyncpa [#allocation3], 1
    %s1211 = scalar_lea.sflag [#allocation3], 1
    %1212 = vsyncpa %s1211, 1

</llo_original>
